<compile_context>
chip_gen: v7x
topology: tpu7x:2x2x1
jax: 0.10.0
libtpu: 0.0.40
codegen_flags: <defaults>
</compile_context>

<pallas_src>
import functools

import jax
import jax.numpy as jnp
import numpy as np
from jax.experimental import pallas as pl
from jax.experimental.pallas import tpu as pltpu


def _round_up(x, m):
    return ((x + m - 1) // m) * m


def _pad2(a, rows, cols):
    r, c = a.shape
    if r == rows and c == cols:
        return a
    return jnp.pad(a, ((0, rows - r), (0, cols - c)))


def _device_kind():
    try:
        return jax.devices()[0].device_kind.lower()
    except Exception:
        return ""


def _vmem_budget_bytes():
    kind = _device_kind()
    if ("v6" in kind) or ("v5" in kind) or ("v4" in kind):
        return 100 * 1024 * 1024       # 128 MiB physical VMEM (v4/v5e/v6e)
    return 48 * 1024 * 1024            # v7x (64 MiB physical) / unknown: conservative


def _num_tensorcores():
    return 2 if ("7" in _device_kind()) else 1   # v7x has 2 TCs per chip


def _bf16_vector_units():
    kind = _device_kind()
    return ("v6" in kind) or ("7" in kind)        # bf16 VPU/EUP on v6e / v7x


def _hidden_tile_candidates(hid_p):
    """Multiples of 128 that divide hid_p, largest first (no hidden over-pad)."""
    m = hid_p // 128
    return [128 * d for d in range(m, 0, -1) if m % d == 0]


def _select_tiles(batch, in_p, hid_p, out_p, cb, budget, tm_req, num_tc):
    """Pick (tm, th) so the double-buffered working set fits the VMEM budget."""
    b8 = _round_up(batch, 8)
    tm = _round_up(min(tm_req, b8), 8)
    if num_tc >= 2 and b8 >= 16 and tm >= b8:
        # Guarantee >= 2 blocks along the parallel batch axis for 2-TC chips.
        tm = _round_up((b8 + 1) // 2, 8)

    def vmem_bytes(tm_, th_):
        # Blocked operands are double-buffered by the Pallas pipeline.
        in_bufs = 2 * (cb * (tm_ * in_p + in_p * th_ + th_ * out_p)
                       + 4 * 8 * (th_ + out_p))           # f32 biases, 8-sublane pad
        out_bufs = 2 * 4 * tm_ * out_p                    # f32 output tile
        scratch = tm_ * th_ * (4 + cb) + 4 * tm_ * out_p + (2 << 20)
        return in_bufs + out_bufs + scratch

    cands = _hidden_tile_candidates(hid_p)
    while True:
        th = next((t for t in cands if vmem_bytes(tm, t) <= budget), cands[-1])
        if vmem_bytes(tm, th) <= budget or tm <= 8:
            break
        tm = max(8, _round_up(tm // 2, 8))
    # TODO(synk): in/out feature dims are not tiled; extremely wide layers may
    # still exceed VMEM at (tm=8, th=128).
    return tm, th


def mlp_kernel(x_ref, w1_ref, b1_ref, w2_ref, b2_ref, o_ref, *, tanh_dtype):
    """One (batch_tile, hidden_chunk) step of tanh(x @ W1 + b1) @ W2 + b2."""
    h_idx = pl.program_id(1)

    # First hidden chunk: seed the f32 output tile with the fc2 bias.
    @pl.when(h_idx == 0)
    def _():
        o_ref[...] = jnp.broadcast_to(b2_ref[...].astype(jnp.float32), o_ref.shape)

    # fc1 chunk (MXU, f32 accumulate) + bias, tanh (EUP), fc2 partial (MXU).
    h = jnp.dot(x_ref[...], w1_ref[...], preferred_element_type=jnp.float32)
    h = (h + b1_ref[...].astype(jnp.float32)).astype(tanh_dtype)
    h = jnp.tanh(h).astype(w2_ref.dtype)
    o_ref[...] += jnp.dot(h, w2_ref[...], preferred_element_type=jnp.float32)


@functools.partial(jax.jit, static_argnames=("compute_dtype", "tm_req"))
def mlp_forward(x, w1, b1, w2, b2, *, compute_dtype=jnp.bfloat16, tm_req=512):
    """x: [B, in]; w1: [in, hid]; b1: [hid]/[1, hid]; w2: [hid, out]; b2: [out]/[1, out]."""
    B, in_f = x.shape
    hid = w1.shape[1]
    out_f = w2.shape[1]
    b1 = b1.reshape(1, hid)
    b2 = b2.reshape(1, out_f)

    cdtype = np.dtype(compute_dtype)
    cb = cdtype.itemsize

    # Lane-dense padded feature dims (multiples of 128); the hidden dim is
    # padded only to 128 (NOT to a multiple of the tile -> no wasted work).
    in_p = _round_up(in_f, 128)
    hid_p = _round_up(hid, 128)
    out_p = _round_up(out_f, 128)

    budget = _vmem_budget_bytes()
    tm, th = _select_tiles(B, in_p, hid_p, out_p, cb, budget, tm_req,
                           _num_tensorcores())
    b_p = _round_up(_round_up(B, 8), tm)
    n_btiles = b_p // tm
    n_htiles = hid_p // th

    # Zero-pad once (exact), cast the big operands to the compute dtype
    # (bf16 by default); biases and the accumulation/output stay f32.
    x_p = _pad2(x, b_p, in_p).astype(cdtype)
    w1_p = _pad2(w1, in_p, hid_p).astype(cdtype)
    w2_p = _pad2(w2, hid_p, out_p).astype(cdtype)
    b1_p = _pad2(b1.astype(jnp.float32), 1, hid_p)
    b2_p = _pad2(b2.astype(jnp.float32), 1, out_p)

    # tanh in bf16 only on chips with bf16 VPU/EUP; f32 on v5e and older.
    tanh_dtype = (jnp.bfloat16
                  if (cdtype == np.dtype(jnp.bfloat16) and _bf16_vector_units())
                  else jnp.float32)

    # Weights are re-streamed once per batch tile unless resident (n_htiles == 1).
    w_bytes = cb * (in_p * hid_p + hid_p * out_p)
    cost = pl.CostEstimate(
        flops=2 * b_p * hid_p * (in_p + out_p),
        transcendentals=b_p * hid_p,
        bytes_accessed=(cb * b_p * in_p + 4 * b_p * out_p
                        + (w_bytes if n_htiles == 1 else n_btiles * w_bytes)),
    )

    out_padded = pl.pallas_call(
        functools.partial(mlp_kernel, tanh_dtype=tanh_dtype),
        out_shape=jax.ShapeDtypeStruct((b_p, out_p), jnp.float32),
        grid_spec=pltpu.PrefetchScalarGridSpec(
            num_scalar_prefetch=0,
            grid=(n_btiles, n_htiles),
            in_specs=[
                pl.BlockSpec((tm, in_p), lambda i, h: (i, 0)),    # x tile
                pl.BlockSpec((in_p, th), lambda i, h: (0, h)),    # w1 chunk
                pl.BlockSpec((1, th), lambda i, h: (0, h)),       # b1 chunk
                pl.BlockSpec((th, out_p), lambda i, h: (h, 0)),   # w2 chunk
                pl.BlockSpec((1, out_p), lambda i, h: (0, 0)),    # b2
            ],
            out_specs=pl.BlockSpec((tm, out_p), lambda i, h: (i, 0)),
        ),
        compiler_params=pltpu.CompilerParams(
            dimension_semantics=("parallel", "arbitrary"),
            vmem_limit_bytes=budget,
        ),
        cost_estimate=cost,
    )(x_p, w1_p, b1_p, w2_p, b2_p)

    return out_padded[:B, :out_f].astype(x.dtype)


def init_params(key, input_size, hidden_size, output_size, dtype=jnp.float32):
    # Deterministic init mimicking nn.Linear's U(-1/sqrt(fan_in), 1/sqrt(fan_in)).
    k1, k2, k3, k4 = jax.random.split(key, 4)
    lim1 = 1.0 / jnp.sqrt(jnp.float32(input_size))
    lim2 = 1.0 / jnp.sqrt(jnp.float32(hidden_size))
    w1 = jax.random.uniform(k1, (input_size, hidden_size), dtype, -lim1, lim1)
    b1 = jax.random.uniform(k2, (1, hidden_size), dtype, -lim1, lim1)
    w2 = jax.random.uniform(k3, (hidden_size, output_size), dtype, -lim2, lim2)
    b2 = jax.random.uniform(k4, (1, output_size), dtype, -lim2, lim2)
    return w1, b1, w2, b2


if __name__ == "__main__":
    key = jax.random.PRNGKey(0)
    batch, input_size, hidden_size, output_size = 8, 16, 32, 8

    kx, kp = jax.random.split(key)
    x = jax.random.normal(kx, (batch, input_size), jnp.float32)
    w1, b1, w2, b2 = init_params(kp, input_size, hidden_size, output_size)

    # Pure-JAX reference of the same math (fc1 -> tanh -> fc2).
    ref = jnp.tanh(x @ w1 + b1) @ w2 + b2

    # f32 compute path: exact against the reference.
    out_f32 = mlp_forward(x, w1, b1, w2, b2, compute_dtype=jnp.float32)
    jax.block_until_ready(out_f32)
    assert out_f32.shape == ref.shape, "shape mismatch vs reference (f32 path)"
    assert jnp.allclose(out_f32, ref, atol=1e-5, rtol=1e-5), "f32 path mismatch"

    # Default bf16 compute path (f32 accumulate / f32 output): loose tolerance.
    out_bf16 = mlp_forward(x, w1, b1, w2, b2)
    jax.block_until_ready(out_bf16)
    assert out_bf16.shape == ref.shape, "shape mismatch vs reference (bf16 path)"
    assert jnp.allclose(out_bf16, ref, atol=5e-2, rtol=5e-2), "bf16 path mismatch"

    print("KERNEL_OK")
</pallas_src>

<mosaic_0001>
module attributes {stable_mosaic.version = 11 : i64} {
  func.func @mlp_kernel(%arg0: i32, %arg1: i32, %arg2: memref<8x128xf32, #tpu.memory_space<vmem>>, %arg3: memref<128x128xf32, #tpu.memory_space<vmem>>, %arg4: memref<1x128xf32, #tpu.memory_space<vmem>>, %arg5: memref<128x128xf32, #tpu.memory_space<vmem>>, %arg6: memref<1x128xf32, #tpu.memory_space<vmem>>, %arg7: memref<8x128xf32, #tpu.memory_space<vmem>>) attributes {dimension_semantics = [#tpu.dimension_semantics<parallel>, #tpu.dimension_semantics<arbitrary>], iteration_bounds = array<i64: 1, 1>, scalar_prefetch = 0 : i64, scratch_operands = 0 : i64, tpu.core_type = #tpu.core_type<tc>, window_params = [{transform_indices = @transform_0, window_bounds = array<i64: 8, 128>}, {transform_indices = @transform_1, window_bounds = array<i64: 128, 128>}, {transform_indices = @transform_2, window_bounds = array<i64: 1, 128>}, {transform_indices = @transform_3, window_bounds = array<i64: 128, 128>}, {pipeline_mode = #tpu.pipeline_mode<synchronous>, transform_indices = @transform_4, window_bounds = array<i64: 1, 128>}, {transform_indices = @transform_5, window_bounds = array<i64: 8, 128>}]} {
    %c0_i32 = arith.constant 0 : i32
    %0 = arith.cmpi eq, %arg1, %c0_i32 : i32
    %1 = arith.extui %0 : i1 to i32
    %c0_i32_0 = arith.constant 0 : i32
    %2 = arith.cmpi ne, %1, %c0_i32_0 : i32
    scf.if %2 {
      %c0_13 = arith.constant 0 : index
      %c0_14 = arith.constant 0 : index
      %15 = vector.load %arg6[%c0_13, %c0_14] : memref<1x128xf32, #tpu.memory_space<vmem>>, vector<1x128xf32>
      %16 = vector.shape_cast %15 : vector<1x128xf32> to vector<1x128xf32>
      %17 = vector.broadcast %16 : vector<1x128xf32> to vector<8x128xf32>
      %c0_15 = arith.constant 0 : index
      %c0_16 = arith.constant 0 : index
      %18 = vector.load %arg7[%c0_15, %c0_16] : memref<8x128xf32, #tpu.memory_space<vmem>>, vector<8x128xf32>
      tpu.vector_store %arg7[%c0_15, %c0_16], %17 {strides = array<i32>} : memref<8x128xf32, #tpu.memory_space<vmem>>, vector<8x128xf32>,
    } else {
    }
    %c0 = arith.constant 0 : index
    %c0_1 = arith.constant 0 : index
    %3 = vector.load %arg2[%c0, %c0_1] : memref<8x128xf32, #tpu.memory_space<vmem>>, vector<8x128xf32>
    %c0_2 = arith.constant 0 : index
    %c0_3 = arith.constant 0 : index
    %4 = vector.load %arg3[%c0_2, %c0_3] : memref<128x128xf32, #tpu.memory_space<vmem>>, vector<128x128xf32>
    %cst = arith.constant dense<0.000000e+00> : vector<8x128xf32>
    %5 = tpu.matmul %3, %4, %cst {dimension_numbers = #tpu.dot_dimension_numbers<[1], [0], [0], [1], [0, 0, 1, 1], [], []>} : vector<8x128xf32>, vector<128x128xf32>, vector<8x128xf32> -> vector<8x128xf32>
    %c0_4 = arith.constant 0 : index
    %c0_5 = arith.constant 0 : index
    %6 = vector.load %arg4[%c0_4, %c0_5] : memref<1x128xf32, #tpu.memory_space<vmem>>, vector<1x128xf32>
    %7 = vector.broadcast %6 : vector<1x128xf32> to vector<8x128xf32>
    %8 = arith.addf %5, %7 : vector<8x128xf32>
    %9 = math.tanh %8 : vector<8x128xf32>
    %c0_6 = arith.constant 0 : index
    %c0_7 = arith.constant 0 : index
    %10 = vector.load %arg7[%c0_6, %c0_7] : memref<8x128xf32, #tpu.memory_space<vmem>>, vector<8x128xf32>
    %c0_8 = arith.constant 0 : index
    %c0_9 = arith.constant 0 : index
    %11 = vector.load %arg5[%c0_8, %c0_9] : memref<128x128xf32, #tpu.memory_space<vmem>>, vector<128x128xf32>
    %cst_10 = arith.constant dense<0.000000e+00> : vector<8x128xf32>
    %12 = tpu.matmul %9, %11, %cst_10 {dimension_numbers = #tpu.dot_dimension_numbers<[1], [0], [0], [1], [0, 0, 1, 1], [], []>} : vector<8x128xf32>, vector<128x128xf32>, vector<8x128xf32> -> vector<8x128xf32>
    %13 = arith.addf %10, %12 : vector<8x128xf32>
    %c0_11 = arith.constant 0 : index
    %c0_12 = arith.constant 0 : index
    %14 = vector.load %arg7[%c0_11, %c0_12] : memref<8x128xf32, #tpu.memory_space<vmem>>, vector<8x128xf32>
    tpu.vector_store %arg7[%c0_11, %c0_12], %13 {strides = array<i32>} : memref<8x128xf32, #tpu.memory_space<vmem>>, vector<8x128xf32>,
    return
  }
  func.func @transform_0(%arg0: i32, %arg1: i32) -> (i32, i32) {
    %c0_i32 = arith.constant 0 : i32
    %c0_i32_0 = arith.constant 0 : i32
    return %arg0, %c0_i32 : i32, i32
  }
  func.func @transform_1(%arg0: i32, %arg1: i32) -> (i32, i32) {
    %c0_i32 = arith.constant 0 : i32
    %c0_i32_0 = arith.constant 0 : i32
    return %c0_i32, %arg1 : i32, i32
  }
  func.func @transform_2(%arg0: i32, %arg1: i32) -> (i32, i32) {
    %c0_i32 = arith.constant 0 : i32
    %c0_i32_0 = arith.constant 0 : i32
    return %c0_i32, %arg1 : i32, i32
  }
  func.func @transform_3(%arg0: i32, %arg1: i32) -> (i32, i32) {
    %c0_i32 = arith.constant 0 : i32
    %c0_i32_0 = arith.constant 0 : i32
    return %arg1, %c0_i32 : i32, i32
  }
  func.func @transform_4(%arg0: i32, %arg1: i32) -> (i32, i32) {
    %c0_i32 = arith.constant 0 : i32
    %c0_i32_0 = arith.constant 0 : i32
    %c0_i32_1 = arith.constant 0 : i32
    return %c0_i32, %c0_i32_0 : i32, i32
  }
  func.func @transform_5(%arg0: i32, %arg1: i32) -> (i32, i32) {
    %c0_i32 = arith.constant 0 : i32
    %c0_i32_0 = arith.constant 0 : i32
    return %arg0, %c0_i32 : i32, i32
  }
}

</mosaic_0001>

<llo_original>
// kernel: mlp_forward.1
$region0: #{mlp_forward.1}
  #allocation0 [shape = 'u32[]', space=smem, size = 0x4, offset = 0x4, fixed_abs, tag = 'smem constant byte address 0x4 - core index']
  #allocation1 [shape = 'u32[144,128]{1,0:T(1,128)}', space=vmem, size = 0x12000, scoped, tag = 'internal scratch']
  %s0 = inlined_call_operand.vmem [shape: f32[8,128], index: 0, kind: input, shape index: {}]
  %s1 = inlined_call_operand.vmem [shape: f32[128,128], index: 1, kind: input, shape index: {}]
  %s2 = inlined_call_operand.vmem [shape: f32[1,128], index: 2, kind: input, shape index: {}]
  %s3 = inlined_call_operand.vmem [shape: f32[128,128], index: 3, kind: input, shape index: {}]
  %s4 = inlined_call_operand.vmem [shape: f32[1,128], index: 4, kind: input, shape index: {}]
  %s5 = inlined_call_operand.hbm [shape: f32[8,128], index: 5, kind: output, shape index: {}]
  %s6 = sld [smem:[#allocation0]]
  $region34: #{mlp_forward.1} parent=0
    _
  %s8 = ssub.s32 1, %s6
  %s9 = scalar_select 0, %s8, %s6
  $region1: #{mlp_forward.1} parent=0
    #allocation2 [shape = 'u8[4096]{0}', space=vmem, size = 0x1000, scoped, tag = 'output window, operand 0, single buffered']
    #allocation3 [shape = 's32[1]{0}', space=sflag, size = 0x4, scoped, tag = 'scoped memory for mlp_forward.1']
    %10 = vsyncpa [#allocation3], 0
    // Predicated region
    $region2: #{mlp_forward.1} parent=1 // pred_check
      _
    $region3: #{mlp_forward.1} parent=1 // pred_check_branch
      %12 = sbr.rel (0) target = $region5
    $region4: #{mlp_forward.1} parent=1 // pred_region
      _
    $region5: #{mlp_forward.1} parent=1 // pred_fallthru
      _
    // Predicated region
    $region6: #{mlp_forward.1} parent=1 // pred_check
      _
    $region7: #{mlp_forward.1} parent=1 // pred_check_branch
      %14 = sbr.rel (0) target = $region9
    $region8: #{mlp_forward.1} parent=1 // pred_region
      _
    $region9: #{mlp_forward.1} parent=1 // pred_fallthru
      _
    // Predicated region
    $region10: #{mlp_forward.1} parent=1 // pred_check
      _
    $region11: #{mlp_forward.1} parent=1 // pred_check_branch
      %16 = sbr.rel (0) target = $region13
    $region12: #{mlp_forward.1} parent=1 // pred_region
      _
    $region13: #{mlp_forward.1} parent=1 // pred_fallthru
      _
    // Predicated region
    $region14: #{mlp_forward.1} parent=1 // pred_check
      _
    $region15: #{mlp_forward.1} parent=1 // pred_check_branch
      %18 = sbr.rel (0) target = $region17
    $region16: #{mlp_forward.1} parent=1 // pred_region
      _
    $region17: #{mlp_forward.1} parent=1 // pred_fallthru
      _
    // Predicated region
    $region18: #{mlp_forward.1} parent=1 // pred_check
      _
    $region19: #{mlp_forward.1} parent=1 // pred_check_branch
      %20 = sbr.rel (0) target = $region21
    $region20: #{mlp_forward.1} parent=1 // pred_region
      _
    $region21: #{mlp_forward.1} parent=1 // pred_fallthru
      _
    %p21 = scmp.eq.s32.totalorder 0, 0
    // Predicated region
    $region22: #{mlp_forward.1} parent=1 // pred_check
      %p22 = pneg %p21
    $region23: #{mlp_forward.1} parent=1 // pred_check_branch
      %24 = sbr.rel (%p22) target = $region25
    $region24: #{mlp_forward.1} parent=1 // pred_region
      %v25 = vld [vmem:[%s4] sm:$0x1]
      %v27 = vlaneseq
      %v28 = vshrl.u32 %v27, 7
      %v29 = vsub.s32 0, %v28
      %v30 = vrot.slane %v25, %v29
      %32 = vst [vmem:[#allocation2] sm:$0xff] %v30
    $region25: #{mlp_forward.1} parent=1 // pred_fallthru
      _
    %v33 = vld [vmem:[%s0] sm:$0xff]
    %v34 = vld [vmem:[%s1] sm:$0xff]
    %v35 = vld [vmem:[%s1 + $0x8] sm:$0xff]
    %v36 = vld [vmem:[%s1 + $0x10] sm:$0xff]
    %v37 = vld [vmem:[%s1 + $0x18] sm:$0xff]
    %v38 = vld [vmem:[%s1 + $0x20] sm:$0xff]
    %v39 = vld [vmem:[%s1 + $0x28] sm:$0xff]
    %v40 = vld [vmem:[%s1 + $0x30] sm:$0xff]
    %v41 = vld [vmem:[%s1 + $0x38] sm:$0xff]
    %v42 = vld [vmem:[%s1 + $0x40] sm:$0xff]
    %v43 = vld [vmem:[%s1 + $0x48] sm:$0xff]
    %v44 = vld [vmem:[%s1 + $0x50] sm:$0xff]
    %v45 = vld [vmem:[%s1 + $0x58] sm:$0xff]
    %v46 = vld [vmem:[%s1 + $0x60] sm:$0xff]
    %v47 = vld [vmem:[%s1 + $0x68] sm:$0xff]
    %v48 = vld [vmem:[%s1 + $0x70] sm:$0xff]
    %v49 = vld [vmem:[%s1 + $0x78] sm:$0xff]
    %v50 = vld [vmem:[%s2] sm:$0x1]
    %v52 = vlaneseq
    %v53 = vshrl.u32 %v52, 7
    %v54 = vsub.s32 0, %v53
    %v55 = vrot.slane %v50, %v54
    %57 = vmatprep.subr.mxu0 0.0
    %58 = vmatpush1.msra.mxu0 %v34
    %59 = vmatprep.subr.mxu0 0.0
    %60 = vmatpush1.msra.mxu0 %v35
    %61 = vmatprep.subr.mxu0 0.0
    %62 = vmatpush1.msra.mxu0 %v36
    %63 = vmatprep.subr.mxu0 0.0
    %64 = vmatpush1.msra.mxu0 %v37
    %65 = vmatprep.subr.mxu0 0.0
    %66 = vmatpush1.msra.mxu0 %v38
    %67 = vmatprep.subr.mxu0 0.0
    %68 = vmatpush1.msra.mxu0 %v39
    %69 = vmatprep.subr.mxu0 0.0
    %70 = vmatpush1.msra.mxu0 %v40
    %71 = vmatprep.subr.mxu0 0.0
    %72 = vmatpush1.msra.mxu0 %v41
    %73 = vmatprep.subr.mxu0 0.0
    %74 = vmatpush1.msra.mxu0 %v42
    %75 = vmatprep.subr.mxu0 0.0
    %76 = vmatpush1.msra.mxu0 %v43
    %77 = vmatprep.subr.mxu0 0.0
    %78 = vmatpush1.msra.mxu0 %v44
    %79 = vmatprep.subr.mxu0 0.0
    %80 = vmatpush1.msra.mxu0 %v45
    %81 = vmatprep.subr.mxu0 0.0
    %82 = vmatpush1.msra.mxu0 %v46
    %83 = vmatprep.subr.mxu0 0.0
    %84 = vmatpush1.msra.mxu0 %v47
    %85 = vmatprep.subr.mxu0 0.0
    %86 = vmatpush1.msra.mxu0 %v48
    %87 = vmatprep.subr.mxu0 0.0
    %88 = vmatpush1.msra.mxu0 %v49
    %89 = vmatprep.subr.mxu0 0.0
    %90 = vmatpush1.msra.mxu0 0.0
    %91 = vmatprep.subr.mxu0 0.0
    %92 = vmatpush1.msra.mxu0 0.0
    %93 = vmatprep.subr.mxu0 0.0
    %94 = vmatpush1.msra.mxu0 0.0
    %95 = vmatprep.subr.mxu0 0.0
    %96 = vmatpush1.msra.mxu0 0.0
    %97 = vmatprep.subr.mxu0 0.0
    %98 = vmatpush1.msra.mxu0 0.0
    %99 = vmatprep.subr.mxu0 0.0
    %100 = vmatpush1.msra.mxu0 0.0
    %101 = vmatprep.subr.mxu0 0.0
    %102 = vmatpush1.msra.mxu0 0.0
    %103 = vmatprep.subr.mxu0 0.0
    %104 = vmatpush1.msra.mxu0 0.0
    %105 = vmatprep.subr.mxu0 0.0
    %106 = vmatpush1.msra.mxu0 0.0
    %107 = vmatprep.subr.mxu0 0.0
    %108 = vmatpush1.msra.mxu0 0.0
    %109 = vmatprep.subr.mxu0 0.0
    %110 = vmatpush1.msra.mxu0 0.0
    %111 = vmatprep.subr.mxu0 0.0
    %112 = vmatpush1.msra.mxu0 0.0
    %113 = vmatprep.subr.mxu0 0.0
    %114 = vmatpush1.msra.mxu0 0.0
    %115 = vmatprep.subr.mxu0 0.0
    %116 = vmatpush1.msra.mxu0 0.0
    %117 = vmatprep.subr.mxu0 0.0
    %118 = vmatpush1.msra.mxu0 0.0
    %119 = vmatprep.subr.mxu0 0.0
    %120 = vmatpush1.msra.mxu0 0.0
    %121 = vmatprep.mubr.f32.mxu0 0.0
    %122 = vmatmul.mubr.f32.gmra.mrb[0].mxu0 %v33
    %v123 = vpop.f32.mrb[0].mxu0
    %v124 = vadd.f32 %v55, %v123
    %v125 = vpop.f32.mrb[0].mxu0
    %126 = vdwg.mxu0
    %v127 = vtanh.pop %v124
    %v128 = vld [vmem:[#allocation2] sm:$0xff]
    %v129 = vld [vmem:[%s3] sm:$0xff]
    %v130 = vld [vmem:[%s3 + $0x8] sm:$0xff]
    %v131 = vld [vmem:[%s3 + $0x10] sm:$0xff]
    %v132 = vld [vmem:[%s3 + $0x18] sm:$0xff]
    %v133 = vld [vmem:[%s3 + $0x20] sm:$0xff]
    %v134 = vld [vmem:[%s3 + $0x28] sm:$0xff]
    %v135 = vld [vmem:[%s3 + $0x30] sm:$0xff]
    %v136 = vld [vmem:[%s3 + $0x38] sm:$0xff]
    %v137 = vld [vmem:[%s3 + $0x40] sm:$0xff]
    %v138 = vld [vmem:[%s3 + $0x48] sm:$0xff]
    %v139 = vld [vmem:[%s3 + $0x50] sm:$0xff]
    %v140 = vld [vmem:[%s3 + $0x58] sm:$0xff]
    %v141 = vld [vmem:[%s3 + $0x60] sm:$0xff]
    %v142 = vld [vmem:[%s3 + $0x68] sm:$0xff]
    %v143 = vld [vmem:[%s3 + $0x70] sm:$0xff]
    %v144 = vld [vmem:[%s3 + $0x78] sm:$0xff]
    %145 = vmatprep.subr.mxu0 0.0
    %146 = vmatpush1.msra.mxu0 %v129
    %147 = vmatprep.subr.mxu0 0.0
    %148 = vmatpush1.msra.mxu0 %v130
    %149 = vmatprep.subr.mxu0 0.0
    %150 = vmatpush1.msra.mxu0 %v131
    %151 = vmatprep.subr.mxu0 0.0
    %152 = vmatpush1.msra.mxu0 %v132
    %153 = vmatprep.subr.mxu0 0.0
    %154 = vmatpush1.msra.mxu0 %v133
    %155 = vmatprep.subr.mxu0 0.0
    %156 = vmatpush1.msra.mxu0 %v134
    %157 = vmatprep.subr.mxu0 0.0
    %158 = vmatpush1.msra.mxu0 %v135
    %159 = vmatprep.subr.mxu0 0.0
    %160 = vmatpush1.msra.mxu0 %v136
    %161 = vmatprep.subr.mxu0 0.0
    %162 = vmatpush1.msra.mxu0 %v137
    %163 = vmatprep.subr.mxu0 0.0
    %164 = vmatpush1.msra.mxu0 %v138
    %165 = vmatprep.subr.mxu0 0.0
    %166 = vmatpush1.msra.mxu0 %v139
    %167 = vmatprep.subr.mxu0 0.0
    %168 = vmatpush1.msra.mxu0 %v140
    %169 = vmatprep.subr.mxu0 0.0
    %170 = vmatpush1.msra.mxu0 %v141
    %171 = vmatprep.subr.mxu0 0.0
    %172 = vmatpush1.msra.mxu0 %v142
    %173 = vmatprep.subr.mxu0 0.0
    %174 = vmatpush1.msra.mxu0 %v143
    %175 = vmatprep.subr.mxu0 0.0
    %176 = vmatpush1.msra.mxu0 %v144
    %177 = vmatprep.subr.mxu0 0.0
    %178 = vmatpush1.msra.mxu0 0.0
    %179 = vmatprep.subr.mxu0 0.0
    %180 = vmatpush1.msra.mxu0 0.0
    %181 = vmatprep.subr.mxu0 0.0
    %182 = vmatpush1.msra.mxu0 0.0
    %183 = vmatprep.subr.mxu0 0.0
    %184 = vmatpush1.msra.mxu0 0.0
    %185 = vmatprep.subr.mxu0 0.0
    %186 = vmatpush1.msra.mxu0 0.0
    %187 = vmatprep.subr.mxu0 0.0
    %188 = vmatpush1.msra.mxu0 0.0
    %189 = vmatprep.subr.mxu0 0.0
    %190 = vmatpush1.msra.mxu0 0.0
    %191 = vmatprep.subr.mxu0 0.0
    %192 = vmatpush1.msra.mxu0 0.0
    %193 = vmatprep.subr.mxu0 0.0
    %194 = vmatpush1.msra.mxu0 0.0
    %195 = vmatprep.subr.mxu0 0.0
    %196 = vmatpush1.msra.mxu0 0.0
    %197 = vmatprep.subr.mxu0 0.0
    %198 = vmatpush1.msra.mxu0 0.0
    %199 = vmatprep.subr.mxu0 0.0
    %200 = vmatpush1.msra.mxu0 0.0
    %201 = vmatprep.subr.mxu0 0.0
    %202 = vmatpush1.msra.mxu0 0.0
    %203 = vmatprep.subr.mxu0 0.0
    %204 = vmatpush1.msra.mxu0 0.0
    %205 = vmatprep.subr.mxu0 0.0
    %206 = vmatpush1.msra.mxu0 0.0
    %207 = vmatprep.subr.mxu0 0.0
    %208 = vmatpush1.msra.mxu0 0.0
    %209 = vmatprep.mubr.f32.mxu0 0.0
    %210 = vmatmul.mubr.f32.gmra.mrb[0].mxu0 %v127
    %v211 = vpop.f32.mrb[0].mxu0
    %v212 = vadd.f32 0.0, %v211
    %v213 = vpop.f32.mrb[0].mxu0
    %214 = vdwg.mxu0
    %v215 = vadd.f32 %v128, %v212
    %216 = vst [vmem:[#allocation2] sm:$0xff] %v215
    // Predicated region
    $region26: #{mlp_forward.1} parent=1 // pred_check
      _
    $region27: #{mlp_forward.1} parent=1 // pred_check_branch
      %218 = sbr.rel (0) target = $region29
    $region28: #{mlp_forward.1} parent=1 // pred_region
      %s220 = ssub.s32 128, 128
      %221 = vsyncadd [#allocation3], %s220
      %s223 = sshll.u32 [#allocation2], 4
      %s224 = int_to_ptr.vmem [resolvable:$true] %s223
      %226 = dma.vmem_to_hbm [thread:$0]  %s224, 128, %s5, [#allocation3]
    $region29: #{mlp_forward.1} parent=1 // pred_fallthru
      _
    // Predicated region
    $region30: #{mlp_forward.1} parent=1 // pred_check
      _
    $region31: #{mlp_forward.1} parent=1 // pred_check_branch
      %228 = sbr.rel (0) target = $region33
    $region32: #{mlp_forward.1} parent=1 // pred_region
      %229 = dma.done [#allocation3], 128
    $region33: #{mlp_forward.1} parent=1 // pred_fallthru
      _
    %230 = vsyncpa [#allocation3], 1

</llo_original>
